<compile_context>
chip_gen: v5e
topology: v5e:2x2
jax: 0.10.0
libtpu: 0.0.40
codegen_flags: <defaults>
</compile_context>

<pallas_src>
import math

import jax
import jax.numpy as jnp
from jax.experimental import pallas as pl
from jax.experimental.pallas import tpu as pltpu

# ---- small config consistent with the module (dim = n_heads * head_dim) ----
B = 2
T = 8
N_HEADS = 4
HEAD_DIM = 8
DIM = N_HEADS * HEAD_DIM          # 32
HIDDEN = 64                       # args.hidden_dim
EPS = 1e-5                        # args.norm_eps


def _rmsnorm(x, w):
    return x * jax.lax.rsqrt(jnp.mean(x * x, axis=-1, keepdims=True) + EPS) * w


# --------------------- fused transformer-block kernel -------------------------
def block_kernel(x_ref, anorm_ref, fnorm_ref, wqkv_ref, wo_ref, w13_ref, w2_ref,
                 cos_ref, sin_e_ref, sin_o_ref, bias_ref, o_ref):
    x = x_ref[...]                                            # (BT, D)
    xn = _rmsnorm(x, anorm_ref[...])                          # attention_norm(x)

    # Fused QKV projection: one (BT, D) @ (D, 3D) matmul, then lane slices.
    qkv = jnp.dot(xn, wqkv_ref[...], preferred_element_type=jnp.float32)
    q = qkv[:, :DIM]
    k = qkv[:, DIM:2 * DIM]
    v = qkv[:, 2 * DIM:]

    # Elementwise RoPE on interleaved (real, imag) pairs:
    #   out[2i]   = t[2i]*cos_i - t[2i+1]*sin_i
    #   out[2i+1] = t[2i+1]*cos_i + t[2i]*sin_i
    # sin_e is (-sin) on even lanes / 0 on odd; sin_o is (+sin) on odd / 0 on
    # even, so the wrap-around elements of the shifts are always zeroed.
    cos = cos_ref[...]
    sin_e = sin_e_ref[...]
    sin_o = sin_o_ref[...]

    def rope(t):
        left = jnp.concatenate([t[:, 1:], t[:, :1]], axis=1)     # t[j+1]
        right = jnp.concatenate([t[:, -1:], t[:, :-1]], axis=1)  # t[j-1]
        return t * cos + left * sin_e + right * sin_o

    q = rope(q)
    k = rope(k)

    # Attention over the flattened token axis; bias_ref is the precomputed
    # additive mask (0 where same batch row & causal, -1e30 otherwise).
    bias = bias_ref[...]                                      # (BT, BT)
    scale = 1.0 / math.sqrt(HEAD_DIM)

    heads = []
    for h in range(N_HEADS):                                  # static unroll, 4 heads
        lo = h * HEAD_DIM
        qh = q[:, lo:lo + HEAD_DIM]
        kh = k[:, lo:lo + HEAD_DIM]
        vh = v[:, lo:lo + HEAD_DIM]
        s = jax.lax.dot_general(qh, kh, (((1,), (1,)), ((), ())),
                                preferred_element_type=jnp.float32) * scale + bias
        s = s - jnp.max(s, axis=-1, keepdims=True)
        p = jnp.exp(s)
        p = p / jnp.sum(p, axis=-1, keepdims=True)
        heads.append(jnp.dot(p, vh, preferred_element_type=jnp.float32))
    attn = jnp.concatenate(heads, axis=1)                     # (BT, D)

    # Single output projection + residual.
    h_res = x + jnp.dot(attn, wo_ref[...], preferred_element_type=jnp.float32)

    # FFN half (SwiGLU) with fused w1/w3 matmul.
    hn = _rmsnorm(h_res, fnorm_ref[...])                      # ffn_norm(h)
    a13 = jnp.dot(hn, w13_ref[...], preferred_element_type=jnp.float32)
    a1 = a13[:, :HIDDEN]
    a3 = a13[:, HIDDEN:]
    g = (a1 * jax.nn.sigmoid(a1)) * a3                        # silu(w1 h) * (w3 h)
    o_ref[...] = h_res + jnp.dot(g, w2_ref[...], preferred_element_type=jnp.float32)


def transformer_block_forward(x, freqs_cos, freqs_sin, params, attn_options=None):
    B_, T_, D_ = x.shape
    BT = B_ * T_

    # RoPE tables expanded to full model width: repeat over interleaved pairs,
    # tile per head, tile over batch; fold the sign/even-odd selection into
    # two masked sin tables so the kernel does pure FMAs.
    cosD = jnp.tile(jnp.repeat(freqs_cos, 2, axis=-1), (1, N_HEADS))   # (T, D)
    sinD = jnp.tile(jnp.repeat(freqs_sin, 2, axis=-1), (1, N_HEADS))   # (T, D)
    even = (jnp.arange(D_) % 2) == 0
    sin_e = jnp.where(even, -sinD, 0.0).astype(jnp.float32)
    sin_o = jnp.where(even, 0.0, sinD).astype(jnp.float32)
    cos_full = jnp.tile(cosD, (B_, 1)).astype(jnp.float32)             # (BT, D)
    sin_e_full = jnp.tile(sin_e, (B_, 1))
    sin_o_full = jnp.tile(sin_o, (B_, 1))

    # Precomputed additive attention bias over flattened tokens:
    # allowed iff same batch row AND causal within the row.
    tok = jnp.arange(BT)
    bidx, tidx = tok // T_, tok % T_
    allowed = (bidx[:, None] == bidx[None, :]) & (tidx[:, None] >= tidx[None, :])
    bias = jnp.where(allowed, 0.0, -1e30).astype(jnp.float32)          # (BT, BT)

    # Weight prep (PyTorch [out, in] -> [in, out]); fuse QKV and w1/w3.
    wqkvT = jnp.concatenate(
        [params["wq"].T, params["wk"].T, params["wv"].T], axis=1)      # (D, 3D)
    woT = params["wo"].T                                               # (D, D)
    w13T = jnp.concatenate([params["w1"].T, params["w3"].T], axis=1)   # (D, 2H)
    w2T = params["w2"].T                                               # (H, D)
    anorm = params["attention_norm"].reshape(1, D_)
    fnorm = params["ffn_norm"].reshape(1, D_)

    x2 = x.reshape(BT, D_)

    def full(shape):
        return pl.BlockSpec(shape, lambda i: (0,) * len(shape))

    out = pl.pallas_call(
        block_kernel,
        out_shape=jax.ShapeDtypeStruct((BT, D_), jnp.float32),
        grid=(1,),
        in_specs=[
            full((BT, D_)),                 # x (flattened)
            full((1, D_)),                  # attention_norm weight
            full((1, D_)),                  # ffn_norm weight
            full((D_, 3 * D_)),             # [wq|wk|wv]^T
            full((D_, D_)),                 # wo^T
            full((D_, 2 * HIDDEN)),         # [w1|w3]^T
            full((HIDDEN, D_)),             # w2^T
            full((BT, D_)),                 # cos table
            full((BT, D_)),                 # masked sin (even lanes)
            full((BT, D_)),                 # masked sin (odd lanes)
            full((BT, BT)),                 # additive causal/batch bias
        ],
        out_specs=full((BT, D_)),
        compiler_params=pltpu.CompilerParams(dimension_semantics=("arbitrary",)),
    )(x2, anorm, fnorm, wqkvT, woT, w13T, w2T,
      cos_full, sin_e_full, sin_o_full, bias)

    return out.reshape(B_, T_, D_), (attn_options or {})


# ---------------- pure-JAX reference (matches PyTorch semantics) --------------
def ref_forward(x, freqs_cos, freqs_sin, params):
    def rms(v, w):
        return v * jax.lax.rsqrt(jnp.mean(v * v, axis=-1, keepdims=True) + EPS) * w

    xn = rms(x, params["attention_norm"])
    q = xn @ params["wq"].T
    k = xn @ params["wk"].T
    v = xn @ params["wv"].T

    def rope(t):
        t = t.reshape(B, T, N_HEADS, HEAD_DIM)
        tr, ti = t[..., 0::2], t[..., 1::2]
        c = freqs_cos[None, :, None, :]
        s = freqs_sin[None, :, None, :]
        outr = tr * c - ti * s
        outi = tr * s + ti * c
        return jnp.stack([outr, outi], axis=-1).reshape(B, T, N_HEADS, HEAD_DIM)

    q, k = rope(q), rope(k)
    v = v.reshape(B, T, N_HEADS, HEAD_DIM)
    q, k, v = (a.transpose(0, 2, 1, 3) for a in (q, k, v))
    s = jnp.einsum("bhtd,bhsd->bhts", q, k) / math.sqrt(HEAD_DIM)
    mask = jnp.tril(jnp.ones((T, T), bool))
    s = jnp.where(mask, s, -jnp.inf)
    p = jax.nn.softmax(s, axis=-1)
    o = jnp.einsum("bhts,bhsd->bhtd", p, v).transpose(0, 2, 1, 3).reshape(B, T, DIM)
    h = x + o @ params["wo"].T

    hn = rms(h, params["ffn_norm"])
    ffn = (jax.nn.silu(hn @ params["w1"].T) * (hn @ params["w3"].T)) @ params["w2"].T
    return h + ffn


if __name__ == "__main__":
    key = jax.random.PRNGKey(0)
    ks = jax.random.split(key, 8)

    def w(k, shape, scale=0.1):
        return (scale * jax.random.normal(k, shape)).astype(jnp.float32)

    params = {
        "wq": w(ks[0], (DIM, DIM)),
        "wk": w(ks[1], (DIM, DIM)),
        "wv": w(ks[2], (DIM, DIM)),
        "wo": w(ks[3], (DIM, DIM)),
        "w1": w(ks[4], (HIDDEN, DIM)),
        "w2": w(ks[5], (DIM, HIDDEN)),
        "w3": w(ks[6], (HIDDEN, DIM)),
        "attention_norm": jnp.ones((DIM,), jnp.float32),   # RMSNorm init = ones
        "ffn_norm": jnp.ones((DIM,), jnp.float32),
    }
    x = w(ks[7], (B, T, DIM), scale=1.0)

    # llama rope tables: (T, head_dim // 2)
    theta = 10000.0
    inv_freq = 1.0 / (theta ** (jnp.arange(0, HEAD_DIM, 2, dtype=jnp.float32) / HEAD_DIM))
    angles = jnp.outer(jnp.arange(T, dtype=jnp.float32), inv_freq)
    freqs_cos, freqs_sin = jnp.cos(angles), jnp.sin(angles)

    out, _attn_options_update = transformer_block_forward(
        x, freqs_cos, freqs_sin, params, attn_options={})
    out = jax.block_until_ready(out)

    ref = ref_forward(x, freqs_cos, freqs_sin, params)
    assert out.shape == (B, T, DIM)
    assert jnp.allclose(out, ref, atol=2e-3, rtol=2e-3), float(jnp.max(jnp.abs(out - ref)))
    print("KERNEL_OK")
</pallas_src>

<mosaic_0001>
module attributes {stable_mosaic.version = 11 : i64} {
  func.func @block_kernel(%arg0: i32, %arg1: memref<16x32xf32, #tpu.memory_space<vmem>>, %arg2: memref<1x32xf32, #tpu.memory_space<vmem>>, %arg3: memref<1x32xf32, #tpu.memory_space<vmem>>, %arg4: memref<32x96xf32, #tpu.memory_space<vmem>>, %arg5: memref<32x32xf32, #tpu.memory_space<vmem>>, %arg6: memref<32x128xf32, #tpu.memory_space<vmem>>, %arg7: memref<64x32xf32, #tpu.memory_space<vmem>>, %arg8: memref<16x32xf32, #tpu.memory_space<vmem>>, %arg9: memref<16x32xf32, #tpu.memory_space<vmem>>, %arg10: memref<16x32xf32, #tpu.memory_space<vmem>>, %arg11: memref<16x16xf32, #tpu.memory_space<vmem>>, %arg12: memref<16x32xf32, #tpu.memory_space<vmem>>) attributes {dimension_semantics = [#tpu.dimension_semantics<arbitrary>], iteration_bounds = array<i64: 1>, scalar_prefetch = 0 : i64, scratch_operands = 0 : i64, tpu.core_type = #tpu.core_type<tc>, window_params = [{pipeline_mode = #tpu.pipeline_mode<synchronous>, transform_indices = @transform_0, window_bounds = array<i64: 16, 32>}, {pipeline_mode = #tpu.pipeline_mode<synchronous>, transform_indices = @transform_1, window_bounds = array<i64: 1, 32>}, {pipeline_mode = #tpu.pipeline_mode<synchronous>, transform_indices = @transform_2, window_bounds = array<i64: 1, 32>}, {pipeline_mode = #tpu.pipeline_mode<synchronous>, transform_indices = @transform_3, window_bounds = array<i64: 32, 96>}, {pipeline_mode = #tpu.pipeline_mode<synchronous>, transform_indices = @transform_4, window_bounds = array<i64: 32, 32>}, {pipeline_mode = #tpu.pipeline_mode<synchronous>, transform_indices = @transform_5, window_bounds = array<i64: 32, 128>}, {pipeline_mode = #tpu.pipeline_mode<synchronous>, transform_indices = @transform_6, window_bounds = array<i64: 64, 32>}, {pipeline_mode = #tpu.pipeline_mode<synchronous>, transform_indices = @transform_7, window_bounds = array<i64: 16, 32>}, {pipeline_mode = #tpu.pipeline_mode<synchronous>, transform_indices = @transform_8, window_bounds = array<i64: 16, 32>}, {pipeline_mode = #tpu.pipeline_mode<synchronous>, transform_indices = @transform_9, window_bounds = array<i64: 16, 32>}, {pipeline_mode = #tpu.pipeline_mode<synchronous>, transform_indices = @transform_10, window_bounds = array<i64: 16, 16>}, {pipeline_mode = #tpu.pipeline_mode<synchronous>, transform_indices = @transform_11, window_bounds = array<i64: 16, 32>}]} {
    %c0 = arith.constant 0 : index
    %c0_0 = arith.constant 0 : index
    %0 = vector.load %arg1[%c0, %c0_0] : memref<16x32xf32, #tpu.memory_space<vmem>>, vector<16x32xf32>
    %c0_1 = arith.constant 0 : index
    %c0_2 = arith.constant 0 : index
    %1 = vector.load %arg2[%c0_1, %c0_2] : memref<1x32xf32, #tpu.memory_space<vmem>>, vector<1x32xf32>
    %2 = arith.mulf %0, %0 : vector<16x32xf32>
    %cst = arith.constant dense<0.000000e+00> : vector<16xf32>
    %3 = vector.multi_reduction <add>, %2, %cst [1] : vector<16x32xf32> to vector<16xf32>
    %4 = vector.shape_cast %3 : vector<16xf32> to vector<16x1xf32>
    %cst_3 = arith.constant 3.200000e+01 : f32
    %5 = vector.broadcast %cst_3 : f32 to vector<16x1xf32>
    %6 = arith.divf %4, %5 : vector<16x1xf32>
    %cst_4 = arith.constant 9.99999974E-6 : f32
    %7 = vector.broadcast %cst_4 : f32 to vector<16x1xf32>
    %8 = arith.addf %6, %7 : vector<16x1xf32>
    %9 = math.rsqrt %8 : vector<16x1xf32>
    %10 = vector.broadcast %9 : vector<16x1xf32> to vector<16x32xf32>
    %11 = arith.mulf %0, %10 : vector<16x32xf32>
    %12 = vector.broadcast %1 : vector<1x32xf32> to vector<16x32xf32>
    %13 = arith.mulf %11, %12 : vector<16x32xf32>
    %c0_5 = arith.constant 0 : index
    %c0_6 = arith.constant 0 : index
    %14 = vector.load %arg4[%c0_5, %c0_6] : memref<32x96xf32, #tpu.memory_space<vmem>>, vector<32x96xf32>
    %cst_7 = arith.constant dense<0.000000e+00> : vector<16x96xf32>
    %15 = tpu.matmul %13, %14, %cst_7 {dimension_numbers = #tpu.dot_dimension_numbers<[1], [0], [0], [1], [0, 0, 1, 1], [], []>} : vector<16x32xf32>, vector<32x96xf32>, vector<16x96xf32> -> vector<16x96xf32>
    %16 = vector.extract_strided_slice %15 {offsets = [0, 0], sizes = [16, 32], strides = [1, 1]} : vector<16x96xf32> to vector<16x32xf32>
    %17 = vector.extract_strided_slice %15 {offsets = [0, 32], sizes = [16, 32], strides = [1, 1]} : vector<16x96xf32> to vector<16x32xf32>
    %18 = vector.extract_strided_slice %15 {offsets = [0, 64], sizes = [16, 32], strides = [1, 1]} : vector<16x96xf32> to vector<16x32xf32>
    %c0_8 = arith.constant 0 : index
    %c0_9 = arith.constant 0 : index
    %19 = vector.load %arg8[%c0_8, %c0_9] : memref<16x32xf32, #tpu.memory_space<vmem>>, vector<16x32xf32>
    %c0_10 = arith.constant 0 : index
    %c0_11 = arith.constant 0 : index
    %20 = vector.load %arg9[%c0_10, %c0_11] : memref<16x32xf32, #tpu.memory_space<vmem>>, vector<16x32xf32>
    %c0_12 = arith.constant 0 : index
    %c0_13 = arith.constant 0 : index
    %21 = vector.load %arg10[%c0_12, %c0_13] : memref<16x32xf32, #tpu.memory_space<vmem>>, vector<16x32xf32>
    %22 = vector.extract_strided_slice %16 {offsets = [0, 1], sizes = [16, 31], strides = [1, 1]} : vector<16x32xf32> to vector<16x31xf32>
    %23 = vector.extract_strided_slice %16 {offsets = [0, 0], sizes = [16, 1], strides = [1, 1]} : vector<16x32xf32> to vector<16x1xf32>
    %24 = tpu.concatenate %22, %23 in 1 : vector<16x31xf32>, vector<16x1xf32> -> vector<16x32xf32>
    %25 = vector.extract_strided_slice %16 {offsets = [0, 31], sizes = [16, 1], strides = [1, 1]} : vector<16x32xf32> to vector<16x1xf32>
    %26 = vector.extract_strided_slice %16 {offsets = [0, 0], sizes = [16, 31], strides = [1, 1]} : vector<16x32xf32> to vector<16x31xf32>
    %27 = tpu.concatenate %25, %26 in 1 : vector<16x1xf32>, vector<16x31xf32> -> vector<16x32xf32>
    %28 = arith.mulf %16, %19 : vector<16x32xf32>
    %29 = arith.mulf %24, %20 : vector<16x32xf32>
    %30 = arith.addf %28, %29 : vector<16x32xf32>
    %31 = arith.mulf %27, %21 : vector<16x32xf32>
    %32 = arith.addf %30, %31 : vector<16x32xf32>
    %33 = vector.extract_strided_slice %17 {offsets = [0, 1], sizes = [16, 31], strides = [1, 1]} : vector<16x32xf32> to vector<16x31xf32>
    %34 = vector.extract_strided_slice %17 {offsets = [0, 0], sizes = [16, 1], strides = [1, 1]} : vector<16x32xf32> to vector<16x1xf32>
    %35 = tpu.concatenate %33, %34 in 1 : vector<16x31xf32>, vector<16x1xf32> -> vector<16x32xf32>
    %36 = vector.extract_strided_slice %17 {offsets = [0, 31], sizes = [16, 1], strides = [1, 1]} : vector<16x32xf32> to vector<16x1xf32>
    %37 = vector.extract_strided_slice %17 {offsets = [0, 0], sizes = [16, 31], strides = [1, 1]} : vector<16x32xf32> to vector<16x31xf32>
    %38 = tpu.concatenate %36, %37 in 1 : vector<16x1xf32>, vector<16x31xf32> -> vector<16x32xf32>
    %39 = arith.mulf %17, %19 : vector<16x32xf32>
    %40 = arith.mulf %35, %20 : vector<16x32xf32>
    %41 = arith.addf %39, %40 : vector<16x32xf32>
    %42 = arith.mulf %38, %21 : vector<16x32xf32>
    %43 = arith.addf %41, %42 : vector<16x32xf32>
    %c0_14 = arith.constant 0 : index
    %c0_15 = arith.constant 0 : index
    %44 = vector.load %arg11[%c0_14, %c0_15] : memref<16x16xf32, #tpu.memory_space<vmem>>, vector<16x16xf32>
    %45 = vector.extract_strided_slice %32 {offsets = [0, 0], sizes = [16, 8], strides = [1, 1]} : vector<16x32xf32> to vector<16x8xf32>
    %46 = vector.extract_strided_slice %43 {offsets = [0, 0], sizes = [16, 8], strides = [1, 1]} : vector<16x32xf32> to vector<16x8xf32>
    %47 = vector.extract_strided_slice %18 {offsets = [0, 0], sizes = [16, 8], strides = [1, 1]} : vector<16x32xf32> to vector<16x8xf32>
    %cst_16 = arith.constant dense<0.000000e+00> : vector<16x16xf32>
    %48 = tpu.matmul %45, %46, %cst_16 {dimension_numbers = #tpu.dot_dimension_numbers<[1], [1], [0], [0], [0, 0, 1, 0], [], []>} : vector<16x8xf32>, vector<16x8xf32>, vector<16x16xf32> -> vector<16x16xf32>
    %cst_17 = arith.constant 0.353553385 : f32
    %49 = vector.broadcast %cst_17 : f32 to vector<16x16xf32>
    %50 = arith.mulf %48, %49 : vector<16x16xf32>
    %51 = arith.addf %50, %44 : vector<16x16xf32>
    %cst_18 = arith.constant dense<0xFF800000> : vector<16xf32>
    %52 = vector.multi_reduction <maximumf>, %51, %cst_18 [1] : vector<16x16xf32> to vector<16xf32>
    %53 = vector.shape_cast %52 : vector<16xf32> to vector<16x1xf32>
    %54 = vector.broadcast %53 : vector<16x1xf32> to vector<16x16xf32>
    %55 = arith.subf %51, %54 : vector<16x16xf32>
    %56 = math.exp %55 : vector<16x16xf32>
    %cst_19 = arith.constant dense<0.000000e+00> : vector<16xf32>
    %57 = vector.multi_reduction <add>, %56, %cst_19 [1] : vector<16x16xf32> to vector<16xf32>
    %58 = vector.shape_cast %57 : vector<16xf32> to vector<16x1xf32>
    %59 = vector.broadcast %58 : vector<16x1xf32> to vector<16x16xf32>
    %60 = arith.divf %56, %59 : vector<16x16xf32>
    %cst_20 = arith.constant dense<0.000000e+00> : vector<16x8xf32>
    %61 = tpu.matmul %60, %47, %cst_20 {dimension_numbers = #tpu.dot_dimension_numbers<[1], [0], [0], [1], [0, 0, 1, 1], [], []>} : vector<16x16xf32>, vector<16x8xf32>, vector<16x8xf32> -> vector<16x8xf32>
    %62 = vector.extract_strided_slice %32 {offsets = [0, 8], sizes = [16, 8], strides = [1, 1]} : vector<16x32xf32> to vector<16x8xf32>
    %63 = vector.extract_strided_slice %43 {offsets = [0, 8], sizes = [16, 8], strides = [1, 1]} : vector<16x32xf32> to vector<16x8xf32>
    %64 = vector.extract_strided_slice %18 {offsets = [0, 8], sizes = [16, 8], strides = [1, 1]} : vector<16x32xf32> to vector<16x8xf32>
    %cst_21 = arith.constant dense<0.000000e+00> : vector<16x16xf32>
    %65 = tpu.matmul %62, %63, %cst_21 {dimension_numbers = #tpu.dot_dimension_numbers<[1], [1], [0], [0], [0, 0, 1, 0], [], []>} : vector<16x8xf32>, vector<16x8xf32>, vector<16x16xf32> -> vector<16x16xf32>
    %cst_22 = arith.constant 0.353553385 : f32
    %66 = vector.broadcast %cst_22 : f32 to vector<16x16xf32>
    %67 = arith.mulf %65, %66 : vector<16x16xf32>
    %68 = arith.addf %67, %44 : vector<16x16xf32>
    %cst_23 = arith.constant dense<0xFF800000> : vector<16xf32>
    %69 = vector.multi_reduction <maximumf>, %68, %cst_23 [1] : vector<16x16xf32> to vector<16xf32>
    %70 = vector.shape_cast %69 : vector<16xf32> to vector<16x1xf32>
    %71 = vector.broadcast %70 : vector<16x1xf32> to vector<16x16xf32>
    %72 = arith.subf %68, %71 : vector<16x16xf32>
    %73 = math.exp %72 : vector<16x16xf32>
    %cst_24 = arith.constant dense<0.000000e+00> : vector<16xf32>
    %74 = vector.multi_reduction <add>, %73, %cst_24 [1] : vector<16x16xf32> to vector<16xf32>
    %75 = vector.shape_cast %74 : vector<16xf32> to vector<16x1xf32>
    %76 = vector.broadcast %75 : vector<16x1xf32> to vector<16x16xf32>
    %77 = arith.divf %73, %76 : vector<16x16xf32>
    %cst_25 = arith.constant dense<0.000000e+00> : vector<16x8xf32>
    %78 = tpu.matmul %77, %64, %cst_25 {dimension_numbers = #tpu.dot_dimension_numbers<[1], [0], [0], [1], [0, 0, 1, 1], [], []>} : vector<16x16xf32>, vector<16x8xf32>, vector<16x8xf32> -> vector<16x8xf32>
    %79 = vector.extract_strided_slice %32 {offsets = [0, 16], sizes = [16, 8], strides = [1, 1]} : vector<16x32xf32> to vector<16x8xf32>
    %80 = vector.extract_strided_slice %43 {offsets = [0, 16], sizes = [16, 8], strides = [1, 1]} : vector<16x32xf32> to vector<16x8xf32>
    %81 = vector.extract_strided_slice %18 {offsets = [0, 16], sizes = [16, 8], strides = [1, 1]} : vector<16x32xf32> to vector<16x8xf32>
    %cst_26 = arith.constant dense<0.000000e+00> : vector<16x16xf32>
    %82 = tpu.matmul %79, %80, %cst_26 {dimension_numbers = #tpu.dot_dimension_numbers<[1], [1], [0], [0], [0, 0, 1, 0], [], []>} : vector<16x8xf32>, vector<16x8xf32>, vector<16x16xf32> -> vector<16x16xf32>
    %cst_27 = arith.constant 0.353553385 : f32
    %83 = vector.broadcast %cst_27 : f32 to vector<16x16xf32>
    %84 = arith.mulf %82, %83 : vector<16x16xf32>
    %85 = arith.addf %84, %44 : vector<16x16xf32>
    %cst_28 = arith.constant dense<0xFF800000> : vector<16xf32>
    %86 = vector.multi_reduction <maximumf>, %85, %cst_28 [1] : vector<16x16xf32> to vector<16xf32>
    %87 = vector.shape_cast %86 : vector<16xf32> to vector<16x1xf32>
    %88 = vector.broadcast %87 : vector<16x1xf32> to vector<16x16xf32>
    %89 = arith.subf %85, %88 : vector<16x16xf32>
    %90 = math.exp %89 : vector<16x16xf32>
    %cst_29 = arith.constant dense<0.000000e+00> : vector<16xf32>
    %91 = vector.multi_reduction <add>, %90, %cst_29 [1] : vector<16x16xf32> to vector<16xf32>
    %92 = vector.shape_cast %91 : vector<16xf32> to vector<16x1xf32>
    %93 = vector.broadcast %92 : vector<16x1xf32> to vector<16x16xf32>
    %94 = arith.divf %90, %93 : vector<16x16xf32>
    %cst_30 = arith.constant dense<0.000000e+00> : vector<16x8xf32>
    %95 = tpu.matmul %94, %81, %cst_30 {dimension_numbers = #tpu.dot_dimension_numbers<[1], [0], [0], [1], [0, 0, 1, 1], [], []>} : vector<16x16xf32>, vector<16x8xf32>, vector<16x8xf32> -> vector<16x8xf32>
    %96 = vector.extract_strided_slice %32 {offsets = [0, 24], sizes = [16, 8], strides = [1, 1]} : vector<16x32xf32> to vector<16x8xf32>
    %97 = vector.extract_strided_slice %43 {offsets = [0, 24], sizes = [16, 8], strides = [1, 1]} : vector<16x32xf32> to vector<16x8xf32>
    %98 = vector.extract_strided_slice %18 {offsets = [0, 24], sizes = [16, 8], strides = [1, 1]} : vector<16x32xf32> to vector<16x8xf32>
    %cst_31 = arith.constant dense<0.000000e+00> : vector<16x16xf32>
    %99 = tpu.matmul %96, %97, %cst_31 {dimension_numbers = #tpu.dot_dimension_numbers<[1], [1], [0], [0], [0, 0, 1, 0], [], []>} : vector<16x8xf32>, vector<16x8xf32>, vector<16x16xf32> -> vector<16x16xf32>
    %cst_32 = arith.constant 0.353553385 : f32
    %100 = vector.broadcast %cst_32 : f32 to vector<16x16xf32>
    %101 = arith.mulf %99, %100 : vector<16x16xf32>
    %102 = arith.addf %101, %44 : vector<16x16xf32>
    %cst_33 = arith.constant dense<0xFF800000> : vector<16xf32>
    %103 = vector.multi_reduction <maximumf>, %102, %cst_33 [1] : vector<16x16xf32> to vector<16xf32>
    %104 = vector.shape_cast %103 : vector<16xf32> to vector<16x1xf32>
    %105 = vector.broadcast %104 : vector<16x1xf32> to vector<16x16xf32>
    %106 = arith.subf %102, %105 : vector<16x16xf32>
    %107 = math.exp %106 : vector<16x16xf32>
    %cst_34 = arith.constant dense<0.000000e+00> : vector<16xf32>
    %108 = vector.multi_reduction <add>, %107, %cst_34 [1] : vector<16x16xf32> to vector<16xf32>
    %109 = vector.shape_cast %108 : vector<16xf32> to vector<16x1xf32>
    %110 = vector.broadcast %109 : vector<16x1xf32> to vector<16x16xf32>
    %111 = arith.divf %107, %110 : vector<16x16xf32>
    %cst_35 = arith.constant dense<0.000000e+00> : vector<16x8xf32>
    %112 = tpu.matmul %111, %98, %cst_35 {dimension_numbers = #tpu.dot_dimension_numbers<[1], [0], [0], [1], [0, 0, 1, 1], [], []>} : vector<16x16xf32>, vector<16x8xf32>, vector<16x8xf32> -> vector<16x8xf32>
    %113 = tpu.concatenate %61, %78, %95, %112 in 1 : vector<16x8xf32>, vector<16x8xf32>, vector<16x8xf32>, vector<16x8xf32> -> vector<16x32xf32>
    %c0_36 = arith.constant 0 : index
    %c0_37 = arith.constant 0 : index
    %114 = vector.load %arg5[%c0_36, %c0_37] : memref<32x32xf32, #tpu.memory_space<vmem>>, vector<32x32xf32>
    %cst_38 = arith.constant dense<0.000000e+00> : vector<16x32xf32>
    %115 = tpu.matmul %113, %114, %cst_38 {dimension_numbers = #tpu.dot_dimension_numbers<[1], [0], [0], [1], [0, 0, 1, 1], [], []>} : vector<16x32xf32>, vector<32x32xf32>, vector<16x32xf32> -> vector<16x32xf32>
    %116 = arith.addf %0, %115 : vector<16x32xf32>
    %c0_39 = arith.constant 0 : index
    %c0_40 = arith.constant 0 : index
    %117 = vector.load %arg3[%c0_39, %c0_40] : memref<1x32xf32, #tpu.memory_space<vmem>>, vector<1x32xf32>
    %118 = arith.mulf %116, %116 : vector<16x32xf32>
    %cst_41 = arith.constant dense<0.000000e+00> : vector<16xf32>
    %119 = vector.multi_reduction <add>, %118, %cst_41 [1] : vector<16x32xf32> to vector<16xf32>
    %120 = vector.shape_cast %119 : vector<16xf32> to vector<16x1xf32>
    %cst_42 = arith.constant 3.200000e+01 : f32
    %121 = vector.broadcast %cst_42 : f32 to vector<16x1xf32>
    %122 = arith.divf %120, %121 : vector<16x1xf32>
    %cst_43 = arith.constant 9.99999974E-6 : f32
    %123 = vector.broadcast %cst_43 : f32 to vector<16x1xf32>
    %124 = arith.addf %122, %123 : vector<16x1xf32>
    %125 = math.rsqrt %124 : vector<16x1xf32>
    %126 = vector.broadcast %125 : vector<16x1xf32> to vector<16x32xf32>
    %127 = arith.mulf %116, %126 : vector<16x32xf32>
    %128 = vector.broadcast %117 : vector<1x32xf32> to vector<16x32xf32>
    %129 = arith.mulf %127, %128 : vector<16x32xf32>
    %c0_44 = arith.constant 0 : index
    %c0_45 = arith.constant 0 : index
    %130 = vector.load %arg6[%c0_44, %c0_45] : memref<32x128xf32, #tpu.memory_space<vmem>>, vector<32x128xf32>
    %cst_46 = arith.constant dense<0.000000e+00> : vector<16x128xf32>
    %131 = tpu.matmul %129, %130, %cst_46 {dimension_numbers = #tpu.dot_dimension_numbers<[1], [0], [0], [1], [0, 0, 1, 1], [], []>} : vector<16x32xf32>, vector<32x128xf32>, vector<16x128xf32> -> vector<16x128xf32>
    %132 = vector.extract_strided_slice %131 {offsets = [0, 0], sizes = [16, 64], strides = [1, 1]} : vector<16x128xf32> to vector<16x64xf32>
    %133 = vector.extract_strided_slice %131 {offsets = [0, 64], sizes = [16, 64], strides = [1, 1]} : vector<16x128xf32> to vector<16x64xf32>
    %134 = arith.negf %132 : vector<16x64xf32>
    %135 = math.exp %134 : vector<16x64xf32>
    %cst_47 = arith.constant 1.000000e+00 : f32
    %136 = vector.broadcast %cst_47 : f32 to vector<16x64xf32>
    %137 = arith.addf %136, %135 : vector<16x64xf32>
    %138 = arith.divf %136, %137 : vector<16x64xf32>
    %139 = arith.mulf %132, %138 : vector<16x64xf32>
    %140 = arith.mulf %139, %133 : vector<16x64xf32>
    %c0_48 = arith.constant 0 : index
    %c0_49 = arith.constant 0 : index
    %141 = vector.load %arg7[%c0_48, %c0_49] : memref<64x32xf32, #tpu.memory_space<vmem>>, vector<64x32xf32>
    %cst_50 = arith.constant dense<0.000000e+00> : vector<16x32xf32>
    %142 = tpu.matmul %140, %141, %cst_50 {dimension_numbers = #tpu.dot_dimension_numbers<[1], [0], [0], [1], [0, 0, 1, 1], [], []>} : vector<16x64xf32>, vector<64x32xf32>, vector<16x32xf32> -> vector<16x32xf32>
    %143 = arith.addf %116, %142 : vector<16x32xf32>
    %c0_51 = arith.constant 0 : index
    %c0_52 = arith.constant 0 : index
    %144 = vector.load %arg12[%c0_51, %c0_52] : memref<16x32xf32, #tpu.memory_space<vmem>>, vector<16x32xf32>
    tpu.vector_store %arg12[%c0_51, %c0_52], %143 {strides = array<i32>} : memref<16x32xf32, #tpu.memory_space<vmem>>, vector<16x32xf32>,
    return
  }
  func.func @transform_0(%arg0: i32) -> (i32, i32) {
    %c0_i32 = arith.constant 0 : i32
    %c0_i32_0 = arith.constant 0 : i32
    %c0_i32_1 = arith.constant 0 : i32
    return %c0_i32, %c0_i32_0 : i32, i32
  }
  func.func @transform_1(%arg0: i32) -> (i32, i32) {
    %c0_i32 = arith.constant 0 : i32
    %c0_i32_0 = arith.constant 0 : i32
    %c0_i32_1 = arith.constant 0 : i32
    return %c0_i32, %c0_i32_0 : i32, i32
  }
  func.func @transform_2(%arg0: i32) -> (i32, i32) {
    %c0_i32 = arith.constant 0 : i32
    %c0_i32_0 = arith.constant 0 : i32
    %c0_i32_1 = arith.constant 0 : i32
    return %c0_i32, %c0_i32_0 : i32, i32
  }
  func.func @transform_3(%arg0: i32) -> (i32, i32) {
    %c0_i32 = arith.constant 0 : i32
    %c0_i32_0 = arith.constant 0 : i32
    %c0_i32_1 = arith.constant 0 : i32
    return %c0_i32, %c0_i32_0 : i32, i32
  }
  func.func @transform_4(%arg0: i32) -> (i32, i32) {
    %c0_i32 = arith.constant 0 : i32
    %c0_i32_0 = arith.constant 0 : i32
    %c0_i32_1 = arith.constant 0 : i32
    return %c0_i32, %c0_i32_0 : i32, i32
  }
  func.func @transform_5(%arg0: i32) -> (i32, i32) {
    %c0_i32 = arith.constant 0 : i32
    %c0_i32_0 = arith.constant 0 : i32
    %c0_i32_1 = arith.constant 0 : i32
    return %c0_i32, %c0_i32_0 : i32, i32
  }
  func.func @transform_6(%arg0: i32) -> (i32, i32) {
    %c0_i32 = arith.constant 0 : i32
    %c0_i32_0 = arith.constant 0 : i32
    %c0_i32_1 = arith.constant 0 : i32
    return %c0_i32, %c0_i32_0 : i32, i32
  }
  func.func @transform_7(%arg0: i32) -> (i32, i32) {
    %c0_i32 = arith.constant 0 : i32
    %c0_i32_0 = arith.constant 0 : i32
    %c0_i32_1 = arith.constant 0 : i32
    return %c0_i32, %c0_i32_0 : i32, i32
  }
  func.func @transform_8(%arg0: i32) -> (i32, i32) {
    %c0_i32 = arith.constant 0 : i32
    %c0_i32_0 = arith.constant 0 : i32
    %c0_i32_1 = arith.constant 0 : i32
    return %c0_i32, %c0_i32_0 : i32, i32
  }
  func.func @transform_9(%arg0: i32) -> (i32, i32) {
    %c0_i32 = arith.constant 0 : i32
    %c0_i32_0 = arith.constant 0 : i32
    %c0_i32_1 = arith.constant 0 : i32
    return %c0_i32, %c0_i32_0 : i32, i32
  }
  func.func @transform_10(%arg0: i32) -> (i32, i32) {
    %c0_i32 = arith.constant 0 : i32
    %c0_i32_0 = arith.constant 0 : i32
    %c0_i32_1 = arith.constant 0 : i32
    return %c0_i32, %c0_i32_0 : i32, i32
  }
  func.func @transform_11(%arg0: i32) -> (i32, i32) {
    %c0_i32 = arith.constant 0 : i32
    %c0_i32_0 = arith.constant 0 : i32
    %c0_i32_1 = arith.constant 0 : i32
    return %c0_i32, %c0_i32_0 : i32, i32
  }
}

</mosaic_0001>

<llo_original>
// kernel: tpu_custom_call.1
$region0: #{tpu_custom_call.1}
  #allocation0 [shape = 'u32[]', space=smem, size = 0x4, offset = 0x4, fixed_abs, tag = 'smem constant byte address 0x4 - core index']
  #allocation1 [shape = 'u32[72,128]{1,0:T(1,128)}', space=vmem, size = 0x9000, scoped, tag = 'internal scratch']
  %s0 = inlined_call_operand.hbm [shape: f32[16,32], index: 0, kind: input, shape index: {}]
  %s1 = inlined_call_operand.hbm [shape: f32[1,32], index: 1, kind: input, shape index: {}]
  %s2 = inlined_call_operand.vmem [shape: f32[1,32], index: 2, kind: input, shape index: {}]
  %s3 = inlined_call_operand.vmem [shape: f32[32,96], index: 3, kind: input, shape index: {}]
  %s4 = inlined_call_operand.vmem [shape: f32[32,32], index: 4, kind: input, shape index: {}]
  %s5 = inlined_call_operand.vmem [shape: f32[32,128], index: 5, kind: input, shape index: {}]
  %s6 = inlined_call_operand.vmem [shape: f32[64,32], index: 6, kind: input, shape index: {}]
  %s7 = inlined_call_operand.hbm [shape: f32[16,32], index: 7, kind: input, shape index: {}]
  %s8 = inlined_call_operand.hbm [shape: f32[16,32], index: 8, kind: input, shape index: {}]
  %s9 = inlined_call_operand.hbm [shape: f32[16,32], index: 9, kind: input, shape index: {}]
  %s10 = inlined_call_operand.hbm [shape: f32[16,16], index: 10, kind: input, shape index: {}]
  %s11 = inlined_call_operand.hbm [shape: f32[16,32], index: 11, kind: output, shape index: {}]
  %s12 = sld [smem:[#allocation0]]
  $region78: #{tpu_custom_call.1} parent=0
    _
  %s14 = ssub.s32 1, %s12
  %s15 = scalar_select 0, %s14, %s12
  $region1: #{tpu_custom_call.1} parent=0
    #allocation2 [shape = 'u8[8192]{0}', space=vmem, size = 0x2000, scoped, tag = 'input window, operand 0, single buffered']
    #allocation3 [shape = 's32[1]{0}', space=sflag, size = 0x4, scoped, tag = 'scoped memory for tpu_custom_call.1']
    #allocation4 [shape = 's32[1]{0}', space=sflag, size = 0x4, scoped, tag = 'scoped memory for tpu_custom_call.1']
    #allocation5 [shape = 'u8[512]{0}', space=vmem, size = 0x400, scoped, tag = 'input window, operand 1, single buffered']
    #allocation6 [shape = 's32[1]{0}', space=sflag, size = 0x4, scoped, tag = 'scoped memory for tpu_custom_call.1']
    #allocation7 [shape = 'u8[8192]{0}', space=vmem, size = 0x2000, scoped, tag = 'input window, operand 7, single buffered']
    #allocation8 [shape = 'u8[8192]{0}', space=vmem, size = 0x2000, scoped, tag = 'input window, operand 8, single buffered']
    #allocation9 [shape = 's32[1]{0}', space=sflag, size = 0x4, scoped, tag = 'scoped memory for tpu_custom_call.1']
    #allocation10 [shape = 'u8[8192]{0}', space=vmem, size = 0x2000, scoped, tag = 'input window, operand 9, single buffered']
    #allocation11 [shape = 'u8[8192]{0}', space=vmem, size = 0x2000, scoped, tag = 'input window, operand 10, single buffered']
    #allocation12 [shape = 's32[1]{0}', space=sflag, size = 0x4, scoped, tag = 'scoped memory for tpu_custom_call.1']
    #allocation13 [shape = 'u8[8192]{0}', space=vmem, size = 0x2000, scoped, tag = 'output window, operand 0, single buffered']
    %16 = vsyncpa [#allocation3], 0
    %17 = vsyncpa [#allocation6], 0
    %18 = vsyncpa [#allocation9], 0
    %19 = vsyncpa [#allocation12], 0
    %20 = vsyncpa [#allocation4], 0
    // Predicated region
    $region2: #{tpu_custom_call.1} parent=1 // pred_check
      _
    $region3: #{tpu_custom_call.1} parent=1 // pred_check_branch
      %22 = sbr.rel (0) target = $region5
    $region4: #{tpu_custom_call.1} parent=1 // pred_region
      %24 = vsyncadd [#allocation3], 0
      %s25 = sshll.u32 %s0, 4
      %s26 = int_to_ptr.hbm [resolvable:$true] %s25
      %s27 = sshll.u32 [#allocation2], 4
      %s28 = int_to_ptr.vmem [resolvable:$true] %s27
      %33 = dma.hbm_to_vmem [thread:$0]  %s26, 256, %s28, [#allocation3], 128, 128, 8
    $region5: #{tpu_custom_call.1} parent=1 // pred_fallthru
      _
    // Predicated region
    $region6: #{tpu_custom_call.1} parent=1 // pred_check
      _
    $region7: #{tpu_custom_call.1} parent=1 // pred_check_branch
      %35 = sbr.rel (0) target = $region9
    $region8: #{tpu_custom_call.1} parent=1 // pred_region
      %37 = vsyncadd [#allocation6], 0
      %s39 = sshll.u32 %s1, 4
      %s40 = int_to_ptr.hbm [resolvable:$true] %s39
      %s41 = sshll.u32 [#allocation5], 4
      %s42 = int_to_ptr.vmem [resolvable:$true] %s41
      %44 = dma.hbm_to_vmem [thread:$0]  %s40, 16, %s42, [#allocation6]
    $region9: #{tpu_custom_call.1} parent=1 // pred_fallthru
      _
    // Predicated region
    $region10: #{tpu_custom_call.1} parent=1 // pred_check
      _
    $region11: #{tpu_custom_call.1} parent=1 // pred_check_branch
      %46 = sbr.rel (0) target = $region13
    $region12: #{tpu_custom_call.1} parent=1 // pred_region
      _
    $region13: #{tpu_custom_call.1} parent=1 // pred_fallthru
      _
    // Predicated region
    $region14: #{tpu_custom_call.1} parent=1 // pred_check
      _
    $region15: #{tpu_custom_call.1} parent=1 // pred_check_branch
      %48 = sbr.rel (0) target = $region17
    $region16: #{tpu_custom_call.1} parent=1 // pred_region
      _
    $region17: #{tpu_custom_call.1} parent=1 // pred_fallthru
      _
    // Predicated region
    $region18: #{tpu_custom_call.1} parent=1 // pred_check
      _
    $region19: #{tpu_custom_call.1} parent=1 // pred_check_branch
      %50 = sbr.rel (0) target = $region21
    $region20: #{tpu_custom_call.1} parent=1 // pred_region
      _
    $region21: #{tpu_custom_call.1} parent=1 // pred_fallthru
      _
    // Predicated region
    $region22: #{tpu_custom_call.1} parent=1 // pred_check
      _
    $region23: #{tpu_custom_call.1} parent=1 // pred_check_branch
      %52 = sbr.rel (0) target = $region25
    $region24: #{tpu_custom_call.1} parent=1 // pred_region
      _
    $region25: #{tpu_custom_call.1} parent=1 // pred_fallthru
      _
    // Predicated region
    $region26: #{tpu_custom_call.1} parent=1 // pred_check
      _
    $region27: #{tpu_custom_call.1} parent=1 // pred_check_branch
      %54 = sbr.rel (0) target = $region29
    $region28: #{tpu_custom_call.1} parent=1 // pred_region
      _
    $region29: #{tpu_custom_call.1} parent=1 // pred_fallthru
      _
    // Predicated region
    $region30: #{tpu_custom_call.1} parent=1 // pred_check
      _
    $region31: #{tpu_custom_call.1} parent=1 // pred_check_branch
      %56 = sbr.rel (0) target = $region33
    $region32: #{tpu_custom_call.1} parent=1 // pred_region
      %58 = vsyncadd [#allocation6], 0
      %s59 = sshll.u32 %s7, 4
      %s60 = int_to_ptr.hbm [resolvable:$true] %s59
      %s61 = sshll.u32 [#allocation7], 4
      %s62 = int_to_ptr.vmem [resolvable:$true] %s61
      %67 = dma.hbm_to_vmem [thread:$0]  %s60, 256, %s62, [#allocation6], 128, 128, 8
    $region33: #{tpu_custom_call.1} parent=1 // pred_fallthru
      _
    // Predicated region
    $region34: #{tpu_custom_call.1} parent=1 // pred_check
      _
    $region35: #{tpu_custom_call.1} parent=1 // pred_check_branch
      %69 = sbr.rel (0) target = $region37
    $region36: #{tpu_custom_call.1} parent=1 // pred_region
      %71 = vsyncadd [#allocation9], 0
      %s72 = sshll.u32 %s8, 4
      %s73 = int_to_ptr.hbm [resolvable:$true] %s72
      %s74 = sshll.u32 [#allocation8], 4
      %s75 = int_to_ptr.vmem [resolvable:$true] %s74
      %80 = dma.hbm_to_vmem [thread:$0]  %s73, 256, %s75, [#allocation9], 128, 128, 8
    $region37: #{tpu_custom_call.1} parent=1 // pred_fallthru
      _
    // Predicated region
    $region38: #{tpu_custom_call.1} parent=1 // pred_check
      _
    $region39: #{tpu_custom_call.1} parent=1 // pred_check_branch
      %82 = sbr.rel (0) target = $region41
    $region40: #{tpu_custom_call.1} parent=1 // pred_region
      %84 = vsyncadd [#allocation9], 0
      %s85 = sshll.u32 %s9, 4
      %s86 = int_to_ptr.hbm [resolvable:$true] %s85
      %s87 = sshll.u32 [#allocation10], 4
      %s88 = int_to_ptr.vmem [resolvable:$true] %s87
      %93 = dma.hbm_to_vmem [thread:$0]  %s86, 256, %s88, [#allocation9], 128, 128, 8
    $region41: #{tpu_custom_call.1} parent=1 // pred_fallthru
      _
    // Predicated region
    $region42: #{tpu_custom_call.1} parent=1 // pred_check
      _
    $region43: #{tpu_custom_call.1} parent=1 // pred_check_branch
      %95 = sbr.rel (0) target = $region45
    $region44: #{tpu_custom_call.1} parent=1 // pred_region
      %97 = vsyncadd [#allocation12], 0
      %s98 = sshll.u32 %s10, 4
      %s99 = int_to_ptr.hbm [resolvable:$true] %s98
      %s100 = sshll.u32 [#allocation11], 4
      %s101 = int_to_ptr.vmem [resolvable:$true] %s100
      %106 = dma.hbm_to_vmem [thread:$0]  %s99, 256, %s101, [#allocation12], 128, 128, 8
    $region45: #{tpu_custom_call.1} parent=1 // pred_fallthru
      _
    // Predicated region
    $region46: #{tpu_custom_call.1} parent=1 // pred_check
      _
    $region47: #{tpu_custom_call.1} parent=1 // pred_check_branch
      %108 = sbr.rel (0) target = $region49
    $region48: #{tpu_custom_call.1} parent=1 // pred_region
      %110 = dma.done [#allocation3], 256
    $region49: #{tpu_custom_call.1} parent=1 // pred_fallthru
      _
    // Predicated region
    $region50: #{tpu_custom_call.1} parent=1 // pred_check
      _
    $region51: #{tpu_custom_call.1} parent=1 // pred_check_branch
      %112 = sbr.rel (0) target = $region53
    $region52: #{tpu_custom_call.1} parent=1 // pred_region
      %114 = dma.done [#allocation6], 16
    $region53: #{tpu_custom_call.1} parent=1 // pred_fallthru
      _
    // Predicated region
    $region54: #{tpu_custom_call.1} parent=1 // pred_check
      _
    $region55: #{tpu_custom_call.1} parent=1 // pred_check_branch
      %116 = sbr.rel (0) target = $region57
    $region56: #{tpu_custom_call.1} parent=1 // pred_region
      %118 = dma.done [#allocation6], 256
    $region57: #{tpu_custom_call.1} parent=1 // pred_fallthru
      _
    // Predicated region
    $region58: #{tpu_custom_call.1} parent=1 // pred_check
      _
    $region59: #{tpu_custom_call.1} parent=1 // pred_check_branch
      %120 = sbr.rel (0) target = $region61
    $region60: #{tpu_custom_call.1} parent=1 // pred_region
      %122 = dma.done [#allocation9], 256
    $region61: #{tpu_custom_call.1} parent=1 // pred_fallthru
      _
    // Predicated region
    $region62: #{tpu_custom_call.1} parent=1 // pred_check
      _
    $region63: #{tpu_custom_call.1} parent=1 // pred_check_branch
      %124 = sbr.rel (0) target = $region65
    $region64: #{tpu_custom_call.1} parent=1 // pred_region
      %126 = dma.done [#allocation9], 256
    $region65: #{tpu_custom_call.1} parent=1 // pred_fallthru
      _
    // Predicated region
    $region66: #{tpu_custom_call.1} parent=1 // pred_check
      _
    $region67: #{tpu_custom_call.1} parent=1 // pred_check_branch
      %128 = sbr.rel (0) target = $region69
    $region68: #{tpu_custom_call.1} parent=1 // pred_region
      %130 = dma.done [#allocation12], 256
    $region69: #{tpu_custom_call.1} parent=1 // pred_fallthru
      _
    %v131 = vld [vmem:[#allocation2] sm:$0xff]
    %v132 = vld [vmem:[#allocation2 + $0x8] sm:$0xff]
    %v133 = vld [vmem:[#allocation5] sm:$0x1]
    %v134 = vmul.f32 %v131, %v131
    %v135 = vmul.f32 %v132, %v132
    %vm136 = vcmask 261120
    %v137 = vsel %vm136, %v134, 0.0
    %138 = vadd.xlane.f32.xlu0 %v137
    %v139 = vpop.xlane.xlu0 %138
    %v140 = vsel %vm136, %v135, 0.0
    %141 = vadd.xlane.f32.xlu0 %v140
    %v142 = vpop.xlane.xlu0 %141
    %v143 = vrcp.pop 32.0
    %v144 = vmul.f32 32.0, %v143
    %v145 = vsub.f32 1.0, %v144
    %v146 = vmul.f32 %v143, %v145
    %v147 = vadd.f32 %v143, %v146
    %vm148 = vweird.f32 %v143
    %v149 = vsel %vm148, %v143, %v147
    %v150 = vmul.f32 %v139, %v149
    %v151 = vmul.f32 %v142, %v149
    %v152 = vadd.f32 %v150, 1e-05
    %v153 = vadd.f32 %v151, 1e-05
    %v154 = vrsqrt.pop %v152
    %v155 = vmul.f32 %v154, %v152
    %v156 = vmul.f32 %v155, %v154
    %v157 = vmul.f32 0.5, %v156
    %v158 = vsub.f32 1.5, %v157
    %v159 = vmul.f32 %v154, %v158
    %vm160 = vweird.f32 %v152
    %vm161 = vweird.f32 %v154
    %vm162 = vmor %vm160, %vm161
    %v163 = vsel %vm162, %v154, %v159
    %v164 = vrsqrt.pop %v153
    %v165 = vmul.f32 %v164, %v153
    %v166 = vmul.f32 %v165, %v164
    %v167 = vmul.f32 0.5, %v166
    %v168 = vsub.f32 1.5, %v167
    %v169 = vmul.f32 %v164, %v168
    %vm170 = vweird.f32 %v153
    %vm171 = vweird.f32 %v164
    %vm172 = vmor %vm170, %vm171
    %v173 = vsel %vm172, %v164, %v169
    %v174 = vmul.f32 %v131, %v163
    %v175 = vmul.f32 %v132, %v173
    %v177 = vperm.slane %v133, 0
    %v179 = vmul.f32 %v174, %v177
    %v180 = vmul.f32 %v175, %v177
    %v181 = vld [vmem:[%s3] sm:$0xff]
    %v182 = vld [vmem:[%s3 + $0x8] sm:$0xff]
    %v183 = vld [vmem:[%s3 + $0x10] sm:$0xff]
    %v184 = vld [vmem:[%s3 + $0x18] sm:$0xff]
    %v186 = vsel %vm136, %v179, 0
    %v189 = vsel %vm136, %v180, 0
    %191 = vmatpush.msra.mxu0 0.0
    %192 = vmatpush.msra.mxu0 0.0
    %193 = vmatpush.msra.mxu0 0.0
    %194 = vmatpush.msra.mxu0 0.0
    %195 = vmatpush.msra.mxu0 0.0
    %196 = vmatpush.msra.mxu0 0.0
    %197 = vmatpush.msra.mxu0 0.0
    %198 = vmatpush.msra.mxu0 0.0
    %199 = vmatpush.msra.mxu0 0.0
    %200 = vmatpush.msra.mxu0 0.0
    %201 = vmatpush.msra.mxu0 0.0
    %202 = vmatpush.msra.mxu0 0.0
    %203 = vmatpush.msra.mxu0 %v184
    %204 = vmatpush.msra.mxu0 %v183
    %205 = vmatpush.msra.mxu0 %v182
    %206 = vmatpush.msra.mxu0 %v181
    %207 = vmatmul.f32.gmra.mxu0 %v186
    %v208 = vpop.f32.mrf.mxu0
    %v209 = vadd.f32 0.0, %v208
    %210 = vmatmul.f32.gmra.mxu0 %v189
    %v211 = vpop.f32.mrf.mxu0
    %v212 = vadd.f32 0.0, %v211
    %213 = vdwg.mxu0
    %v214 = vld [vmem:[#allocation7] sm:$0xff]
    %v215 = vld [vmem:[#allocation7 + $0x8] sm:$0xff]
    %v216 = vld [vmem:[#allocation8] sm:$0xff]
    %v217 = vld [vmem:[#allocation8 + $0x8] sm:$0xff]
    %v218 = vld [vmem:[#allocation10] sm:$0xff]
    %v219 = vld [vmem:[#allocation10 + $0x8] sm:$0xff]
    %222 = vrot.lane.b32.xlu0 %v209, 127
    %v223 = vpop.permute.xlu0 %222
    %224 = vrot.lane.b32.xlu0 %v212, 127
    %v225 = vpop.permute.xlu0 %224
    %228 = vrot.lane.b32.xlu0 %v209, 31
    %v229 = vpop.permute.xlu0 %228
    %230 = vrot.lane.b32.xlu0 %v212, 31
    %v231 = vpop.permute.xlu0 %230
    %vm234 = vcmask 252928
    %v235 = vsel %vm234, %v223, %v229
    %v236 = vsel %vm234, %v225, %v231
    %237 = vrot.lane.b32.xlu0 %v209, 97
    %v238 = vpop.permute.xlu0 %237
    %239 = vrot.lane.b32.xlu0 %v212, 97
    %v240 = vpop.permute.xlu0 %239
    %243 = vrot.lane.b32.xlu0 %v209, 1
    %v244 = vpop.permute.xlu0 %243
    %245 = vrot.lane.b32.xlu0 %v212, 1
    %v246 = vpop.permute.xlu0 %245
    %vm249 = vcmask 7168
    %v250 = vsel %vm249, %v238, %v244
    %v251 = vsel %vm249, %v240, %v246
    %v252 = vmul.f32 %v209, %v214
    %v253 = vmul.f32 %v212, %v215
    %v254 = vmul.f32 %v235, %v216
    %v255 = vmul.f32 %v236, %v217
    %v256 = vadd.f32 %v252, %v254
    %v257 = vadd.f32 %v253, %v255
    %v258 = vmul.f32 %v250, %v218
    %v259 = vmul.f32 %v251, %v219
    %v260 = vadd.f32 %v256, %v258
    %v261 = vadd.f32 %v257, %v259
    %262 = vrot.lane.b32.xlu0 %v209, 95
    %v263 = vpop.permute.xlu0 %262
    %264 = vrot.lane.b32.xlu0 %v212, 95
    %v265 = vpop.permute.xlu0 %264
    %v268 = vsel %vm234, %v263, %v223
    %v269 = vsel %vm234, %v265, %v225
    %270 = vrot.lane.b32.xlu0 %v209, 65
    %v271 = vpop.permute.xlu0 %270
    %272 = vrot.lane.b32.xlu0 %v212, 65
    %v273 = vpop.permute.xlu0 %272
    %v276 = vsel %vm249, %v271, %v238
    %v277 = vsel %vm249, %v273, %v240
    %280 = vrot.lane.b32.xlu0 %v214, 32
    %v281 = vpop.permute.xlu0 %280
    %282 = vrot.lane.b32.xlu0 %v215, 32
    %v283 = vpop.permute.xlu0 %282
    %v286 = vmul.f32 %v209, %v281
    %v287 = vmul.f32 %v212, %v283
    %v288 = vmul.f32 %v268, %v216
    %v289 = vmul.f32 %v269, %v217
    %292 = vrot.lane.b32.xlu0 %v288, 32
    %v293 = vpop.permute.xlu0 %292
    %294 = vrot.lane.b32.xlu0 %v289, 32
    %v295 = vpop.permute.xlu0 %294
    %v298 = vadd.f32 %v286, %v293
    %v299 = vadd.f32 %v287, %v295
    %v300 = vmul.f32 %v276, %v218
    %v301 = vmul.f32 %v277, %v219
    %304 = vrot.lane.b32.xlu0 %v300, 32
    %v305 = vpop.permute.xlu0 %304
    %306 = vrot.lane.b32.xlu0 %v301, 32
    %v307 = vpop.permute.xlu0 %306
    %v310 = vadd.f32 %v298, %v305
    %v311 = vadd.f32 %v299, %v307
    %v312 = vld [vmem:[#allocation11] sm:$0xff]
    %v313 = vld [vmem:[#allocation11 + $0x8] sm:$0xff]
    %316 = vrot.lane.b32.xlu0 %v310, 96
    %v317 = vpop.permute.xlu0 %316
    %318 = vrot.lane.b32.xlu0 %v311, 96
    %v319 = vpop.permute.xlu0 %318
    %vm320 = vcmask 64512
    %v322 = vsel %vm320, %v260, 0
    %v325 = vsel %vm320, %v261, 0
    %v327 = vsel %vm320, %v317, 0
    %v329 = vsel %vm320, %v319, 0
    %331 = vmatpush.xpose.msra.mxu0 0.0
    %332 = vmatpush.xpose.msra.mxu0 0.0
    %333 = vmatpush.xpose.msra.mxu0 0.0
    %334 = vmatpush.xpose.msra.mxu0 0.0
    %335 = vmatpush.xpose.msra.mxu0 0.0
    %336 = vmatpush.xpose.msra.mxu0 0.0
    %337 = vmatpush.xpose.msra.mxu0 0.0
    %338 = vmatpush.xpose.msra.mxu0 0.0
    %339 = vmatpush.xpose.msra.mxu0 0.0
    %340 = vmatpush.xpose.msra.mxu0 0.0
    %341 = vmatpush.xpose.msra.mxu0 0.0
    %342 = vmatpush.xpose.msra.mxu0 0.0
    %343 = vmatpush.xpose.msra.mxu0 0.0
    %344 = vmatpush.xpose.msra.mxu0 0.0
    %345 = vmatpush.xpose.msra.mxu0 %v329
    %346 = vmatpush.xpose.msra.mxu0 %v327
    %347 = vmatmul.f32.gmra.mxu0 %v322
    %v348 = vpop.f32.mrf.mxu0
    %v349 = vadd.f32 0.0, %v348
    %350 = vmatmul.f32.gmra.mxu0 %v325
    %v351 = vpop.f32.mrf.mxu0
    %v352 = vadd.f32 0.0, %v351
    %353 = vdwg.mxu0
    %v354 = vmul.f32 %v349, 0.35355338
    %v355 = vmul.f32 %v352, 0.35355338
    %v356 = vadd.f32 %v354, %v312
    %v357 = vadd.f32 %v355, %v313
    %vm358 = vcmask 130048
    %v359 = vsel %vm358, %v356, -inf
    %360 = vmax.xlane.f32.xlu0 %v359
    %v361 = vpop.xlane.xlu0 %360
    %v362 = vsel %vm358, %v357, -inf
    %363 = vmax.xlane.f32.xlu0 %v362
    %v364 = vpop.xlane.xlu0 %363
    %v365 = vsub.f32 %v356, %v361
    %v366 = vsub.f32 %v357, %v364
    %v367 = vmul.f32 %v365, 1.442695
    %v368 = vpow.pop %v367
    %v369 = vmul.f32 %v366, 1.442695
    %v370 = vpow.pop %v369
    %v371 = vsel %vm358, %v368, 0.0
    %372 = vadd.xlane.f32.xlu0 %v371
    %v373 = vpop.xlane.xlu0 %372
    %v374 = vsel %vm358, %v370, 0.0
    %375 = vadd.xlane.f32.xlu0 %v374
    %v376 = vpop.xlane.xlu0 %375
    %v377 = vrcp.pop %v373
    %v378 = vmul.f32 %v373, %v377
    %v379 = vsub.f32 1.0, %v378
    %v380 = vmul.f32 %v377, %v379
    %v381 = vadd.f32 %v377, %v380
    %vm382 = vweird.f32 %v373
    %vm383 = vweird.f32 %v377
    %vm384 = vmor %vm382, %vm383
    %v385 = vsel %vm384, %v377, %v381
    %v386 = vand.u32 2147483647, %v373
    %vm387 = vcmp.eq.f32.partialorder %v386, 8.507059e+37
    %v388 = vand.u32 %v373, 2147483648
    %v389 = vor.u32 1.1754944e-38, %v388
    %v390 = vsel %vm387, %v389, %v385
    %v391 = vmul.f32 %v368, %v390
    %v392 = vrcp.pop %v376
    %v393 = vmul.f32 %v376, %v392
    %v394 = vsub.f32 1.0, %v393
    %v395 = vmul.f32 %v392, %v394
    %v396 = vadd.f32 %v392, %v395
    %vm397 = vweird.f32 %v376
    %vm398 = vweird.f32 %v392
    %vm399 = vmor %vm397, %vm398
    %v400 = vsel %vm399, %v392, %v396
    %v401 = vand.u32 2147483647, %v376
    %vm402 = vcmp.eq.f32.partialorder %v401, 8.507059e+37
    %v403 = vand.u32 %v376, 2147483648
    %v404 = vor.u32 1.1754944e-38, %v403
    %v405 = vsel %vm402, %v404, %v400
    %v406 = vmul.f32 %v370, %v405
    %407 = vrot.lane.b32.xlu0 %v209, 64
    %v408 = vpop.permute.xlu0 %407
    %409 = vrot.lane.b32.xlu0 %v212, 64
    %v410 = vpop.permute.xlu0 %409
    %v414 = vsel %vm358, %v391, 0
    %v417 = vsel %vm358, %v406, 0
    %419 = vmatpush.msra.mxu0 0.0
    %420 = vmatpush.msra.mxu0 0.0
    %421 = vmatpush.msra.mxu0 0.0
    %422 = vmatpush.msra.mxu0 0.0
    %423 = vmatpush.msra.mxu0 0.0
    %424 = vmatpush.msra.mxu0 0.0
    %425 = vmatpush.msra.mxu0 0.0
    %426 = vmatpush.msra.mxu0 0.0
    %427 = vmatpush.msra.mxu0 0.0
    %428 = vmatpush.msra.mxu0 0.0
    %429 = vmatpush.msra.mxu0 0.0
    %430 = vmatpush.msra.mxu0 0.0
    %431 = vmatpush.msra.mxu0 0.0
    %432 = vmatpush.msra.mxu0 0.0
    %433 = vmatpush.msra.mxu0 %v410
    %434 = vmatpush.msra.mxu0 %v408
    %435 = vmatmul.f32.gmra.mxu0 %v414
    %v436 = vpop.f32.mrf.mxu0
    %v437 = vadd.f32 0.0, %v436
    %438 = vmatmul.f32.gmra.mxu0 %v417
    %v439 = vpop.f32.mrf.mxu0
    %v440 = vadd.f32 0.0, %v439
    %441 = vdwg.mxu0
    %442 = vrot.lane.b32.xlu0 %v260, 120
    %v443 = vpop.permute.xlu0 %442
    %444 = vrot.lane.b32.xlu0 %v261, 120
    %v445 = vpop.permute.xlu0 %444
    %446 = vrot.lane.b32.xlu0 %v310, 88
    %v447 = vpop.permute.xlu0 %446
    %448 = vrot.lane.b32.xlu0 %v311, 88
    %v449 = vpop.permute.xlu0 %448
    %v450 = vsel %vm320, %v443, 0
    %v452 = vsel %vm320, %v445, 0
    %v454 = vsel %vm320, %v447, 0
    %v456 = vsel %vm320, %v449, 0
    %458 = vmatpush.xpose.msra.mxu0 0.0
    %459 = vmatpush.xpose.msra.mxu0 0.0
    %460 = vmatpush.xpose.msra.mxu0 0.0
    %461 = vmatpush.xpose.msra.mxu0 0.0
    %462 = vmatpush.xpose.msra.mxu0 0.0
    %463 = vmatpush.xpose.msra.mxu0 0.0
    %464 = vmatpush.xpose.msra.mxu0 0.0
    %465 = vmatpush.xpose.msra.mxu0 0.0
    %466 = vmatpush.xpose.msra.mxu0 0.0
    %467 = vmatpush.xpose.msra.mxu0 0.0
    %468 = vmatpush.xpose.msra.mxu0 0.0
    %469 = vmatpush.xpose.msra.mxu0 0.0
    %470 = vmatpush.xpose.msra.mxu0 0.0
    %471 = vmatpush.xpose.msra.mxu0 0.0
    %472 = vmatpush.xpose.msra.mxu0 %v456
    %473 = vmatpush.xpose.msra.mxu0 %v454
    %474 = vmatmul.f32.gmra.mxu0 %v450
    %v475 = vpop.f32.mrf.mxu0
    %v476 = vadd.f32 0.0, %v475
    %477 = vmatmul.f32.gmra.mxu0 %v452
    %v478 = vpop.f32.mrf.mxu0
    %v479 = vadd.f32 0.0, %v478
    %480 = vdwg.mxu0
    %v481 = vmul.f32 %v476, 0.35355338
    %v482 = vmul.f32 %v479, 0.35355338
    %v483 = vadd.f32 %v481, %v312
    %v484 = vadd.f32 %v482, %v313
    %v485 = vsel %vm358, %v483, -inf
    %486 = vmax.xlane.f32.xlu0 %v485
    %v487 = vpop.xlane.xlu0 %486
    %v488 = vsel %vm358, %v484, -inf
    %489 = vmax.xlane.f32.xlu0 %v488
    %v490 = vpop.xlane.xlu0 %489
    %v491 = vsub.f32 %v483, %v487
    %v492 = vsub.f32 %v484, %v490
    %v493 = vmul.f32 %v491, 1.442695
    %v494 = vpow.pop %v493
    %v495 = vmul.f32 %v492, 1.442695
    %v496 = vpow.pop %v495
    %v497 = vsel %vm358, %v494, 0.0
    %498 = vadd.xlane.f32.xlu0 %v497
    %v499 = vpop.xlane.xlu0 %498
    %v500 = vsel %vm358, %v496, 0.0
    %501 = vadd.xlane.f32.xlu0 %v500
    %v502 = vpop.xlane.xlu0 %501
    %v503 = vrcp.pop %v499
    %v504 = vmul.f32 %v499, %v503
    %v505 = vsub.f32 1.0, %v504
    %v506 = vmul.f32 %v503, %v505
    %v507 = vadd.f32 %v503, %v506
    %vm508 = vweird.f32 %v499
    %vm509 = vweird.f32 %v503
    %vm510 = vmor %vm508, %vm509
    %v511 = vsel %vm510, %v503, %v507
    %v512 = vand.u32 2147483647, %v499
    %vm513 = vcmp.eq.f32.partialorder %v512, 8.507059e+37
    %v514 = vand.u32 %v499, 2147483648
    %v515 = vor.u32 1.1754944e-38, %v514
    %v516 = vsel %vm513, %v515, %v511
    %v517 = vmul.f32 %v494, %v516
    %v518 = vrcp.pop %v502
    %v519 = vmul.f32 %v502, %v518
    %v520 = vsub.f32 1.0, %v519
    %v521 = vmul.f32 %v518, %v520
    %v522 = vadd.f32 %v518, %v521
    %vm523 = vweird.f32 %v502
    %vm524 = vweird.f32 %v518
    %vm525 = vmor %vm523, %vm524
    %v526 = vsel %vm525, %v518, %v522
    %v527 = vand.u32 2147483647, %v502
    %vm528 = vcmp.eq.f32.partialorder %v527, 8.507059e+37
    %v529 = vand.u32 %v502, 2147483648
    %v530 = vor.u32 1.1754944e-38, %v529
    %v531 = vsel %vm528, %v530, %v526
    %v532 = vmul.f32 %v496, %v531
    %533 = vrot.lane.b32.xlu0 %v209, 56
    %v534 = vpop.permute.xlu0 %533
    %535 = vrot.lane.b32.xlu0 %v212, 56
    %v536 = vpop.permute.xlu0 %535
    %v540 = vsel %vm358, %v517, 0
    %v543 = vsel %vm358, %v532, 0
    %545 = vmatpush.msra.mxu0 0.0
    %546 = vmatpush.msra.mxu0 0.0
    %547 = vmatpush.msra.mxu0 0.0
    %548 = vmatpush.msra.mxu0 0.0
    %549 = vmatpush.msra.mxu0 0.0
    %550 = vmatpush.msra.mxu0 0.0
    %551 = vmatpush.msra.mxu0 0.0
    %552 = vmatpush.msra.mxu0 0.0
    %553 = vmatpush.msra.mxu0 0.0
    %554 = vmatpush.msra.mxu0 0.0
    %555 = vmatpush.msra.mxu0 0.0
    %556 = vmatpush.msra.mxu0 0.0
    %557 = vmatpush.msra.mxu0 0.0
    %558 = vmatpush.msra.mxu0 0.0
    %559 = vmatpush.msra.mxu0 %v536
    %560 = vmatpush.msra.mxu0 %v534
    %561 = vmatmul.f32.gmra.mxu0 %v540
    %v562 = vpop.f32.mrf.mxu0
    %v563 = vadd.f32 0.0, %v562
    %564 = vmatmul.f32.gmra.mxu0 %v543
    %v565 = vpop.f32.mrf.mxu0
    %v566 = vadd.f32 0.0, %v565
    %567 = vdwg.mxu0
    %568 = vrot.lane.b32.xlu0 %v260, 112
    %v569 = vpop.permute.xlu0 %568
    %570 = vrot.lane.b32.xlu0 %v261, 112
    %v571 = vpop.permute.xlu0 %570
    %572 = vrot.lane.b32.xlu0 %v310, 80
    %v573 = vpop.permute.xlu0 %572
    %574 = vrot.lane.b32.xlu0 %v311, 80
    %v575 = vpop.permute.xlu0 %574
    %v576 = vsel %vm320, %v569, 0
    %v578 = vsel %vm320, %v571, 0
    %v580 = vsel %vm320, %v573, 0
    %v582 = vsel %vm320, %v575, 0
    %584 = vmatpush.xpose.msra.mxu0 0.0
    %585 = vmatpush.xpose.msra.mxu0 0.0
    %586 = vmatpush.xpose.msra.mxu0 0.0
    %587 = vmatpush.xpose.msra.mxu0 0.0
    %588 = vmatpush.xpose.msra.mxu0 0.0
    %589 = vmatpush.xpose.msra.mxu0 0.0
    %590 = vmatpush.xpose.msra.mxu0 0.0
    %591 = vmatpush.xpose.msra.mxu0 0.0
    %592 = vmatpush.xpose.msra.mxu0 0.0
    %593 = vmatpush.xpose.msra.mxu0 0.0
    %594 = vmatpush.xpose.msra.mxu0 0.0
    %595 = vmatpush.xpose.msra.mxu0 0.0
    %596 = vmatpush.xpose.msra.mxu0 0.0
    %597 = vmatpush.xpose.msra.mxu0 0.0
    %598 = vmatpush.xpose.msra.mxu0 %v582
    %599 = vmatpush.xpose.msra.mxu0 %v580
    %600 = vmatmul.f32.gmra.mxu0 %v576
    %v601 = vpop.f32.mrf.mxu0
    %v602 = vadd.f32 0.0, %v601
    %603 = vmatmul.f32.gmra.mxu0 %v578
    %v604 = vpop.f32.mrf.mxu0
    %v605 = vadd.f32 0.0, %v604
    %606 = vdwg.mxu0
    %v607 = vmul.f32 %v602, 0.35355338
    %v608 = vmul.f32 %v605, 0.35355338
    %v609 = vadd.f32 %v607, %v312
    %v610 = vadd.f32 %v608, %v313
    %v611 = vsel %vm358, %v609, -inf
    %612 = vmax.xlane.f32.xlu0 %v611
    %v613 = vpop.xlane.xlu0 %612
    %v614 = vsel %vm358, %v610, -inf
    %615 = vmax.xlane.f32.xlu0 %v614
    %v616 = vpop.xlane.xlu0 %615
    %v617 = vsub.f32 %v609, %v613
    %v618 = vsub.f32 %v610, %v616
    %v619 = vmul.f32 %v617, 1.442695
    %v620 = vpow.pop %v619
    %v621 = vmul.f32 %v618, 1.442695
    %v622 = vpow.pop %v621
    %v623 = vsel %vm358, %v620, 0.0
    %624 = vadd.xlane.f32.xlu0 %v623
    %v625 = vpop.xlane.xlu0 %624
    %v626 = vsel %vm358, %v622, 0.0
    %627 = vadd.xlane.f32.xlu0 %v626
    %v628 = vpop.xlane.xlu0 %627
    %v629 = vrcp.pop %v625
    %v630 = vmul.f32 %v625, %v629
    %v631 = vsub.f32 1.0, %v630
    %v632 = vmul.f32 %v629, %v631
    %v633 = vadd.f32 %v629, %v632
    %vm634 = vweird.f32 %v625
    %vm635 = vweird.f32 %v629
    %vm636 = vmor %vm634, %vm635
    %v637 = vsel %vm636, %v629, %v633
    %v638 = vand.u32 2147483647, %v625
    %vm639 = vcmp.eq.f32.partialorder %v638, 8.507059e+37
    %v640 = vand.u32 %v625, 2147483648
    %v641 = vor.u32 1.1754944e-38, %v640
    %v642 = vsel %vm639, %v641, %v637
    %v643 = vmul.f32 %v620, %v642
    %v644 = vrcp.pop %v628
    %v645 = vmul.f32 %v628, %v644
    %v646 = vsub.f32 1.0, %v645
    %v647 = vmul.f32 %v644, %v646
    %v648 = vadd.f32 %v644, %v647
    %vm649 = vweird.f32 %v628
    %vm650 = vweird.f32 %v644
    %vm651 = vmor %vm649, %vm650
    %v652 = vsel %vm651, %v644, %v648
    %v653 = vand.u32 2147483647, %v628
    %vm654 = vcmp.eq.f32.partialorder %v653, 8.507059e+37
    %v655 = vand.u32 %v628, 2147483648
    %v656 = vor.u32 1.1754944e-38, %v655
    %v657 = vsel %vm654, %v656, %v652
    %v658 = vmul.f32 %v622, %v657
    %659 = vrot.lane.b32.xlu0 %v209, 48
    %v660 = vpop.permute.xlu0 %659
    %661 = vrot.lane.b32.xlu0 %v212, 48
    %v662 = vpop.permute.xlu0 %661
    %v666 = vsel %vm358, %v643, 0
    %v669 = vsel %vm358, %v658, 0
    %671 = vmatpush.msra.mxu0 0.0
    %672 = vmatpush.msra.mxu0 0.0
    %673 = vmatpush.msra.mxu0 0.0
    %674 = vmatpush.msra.mxu0 0.0
    %675 = vmatpush.msra.mxu0 0.0
    %676 = vmatpush.msra.mxu0 0.0
    %677 = vmatpush.msra.mxu0 0.0
    %678 = vmatpush.msra.mxu0 0.0
    %679 = vmatpush.msra.mxu0 0.0
    %680 = vmatpush.msra.mxu0 0.0
    %681 = vmatpush.msra.mxu0 0.0
    %682 = vmatpush.msra.mxu0 0.0
    %683 = vmatpush.msra.mxu0 0.0
    %684 = vmatpush.msra.mxu0 0.0
    %685 = vmatpush.msra.mxu0 %v662
    %686 = vmatpush.msra.mxu0 %v660
    %687 = vmatmul.f32.gmra.mxu0 %v666
    %v688 = vpop.f32.mrf.mxu0
    %v689 = vadd.f32 0.0, %v688
    %690 = vmatmul.f32.gmra.mxu0 %v669
    %v691 = vpop.f32.mrf.mxu0
    %v692 = vadd.f32 0.0, %v691
    %693 = vdwg.mxu0
    %694 = vrot.lane.b32.xlu0 %v260, 104
    %v695 = vpop.permute.xlu0 %694
    %696 = vrot.lane.b32.xlu0 %v261, 104
    %v697 = vpop.permute.xlu0 %696
    %698 = vrot.lane.b32.xlu0 %v310, 72
    %v699 = vpop.permute.xlu0 %698
    %700 = vrot.lane.b32.xlu0 %v311, 72
    %v701 = vpop.permute.xlu0 %700
    %v702 = vsel %vm320, %v695, 0
    %v704 = vsel %vm320, %v697, 0
    %v706 = vsel %vm320, %v699, 0
    %v708 = vsel %vm320, %v701, 0
    %710 = vmatpush.xpose.msra.mxu0 0.0
    %711 = vmatpush.xpose.msra.mxu0 0.0
    %712 = vmatpush.xpose.msra.mxu0 0.0
    %713 = vmatpush.xpose.msra.mxu0 0.0
    %714 = vmatpush.xpose.msra.mxu0 0.0
    %715 = vmatpush.xpose.msra.mxu0 0.0
    %716 = vmatpush.xpose.msra.mxu0 0.0
    %717 = vmatpush.xpose.msra.mxu0 0.0
    %718 = vmatpush.xpose.msra.mxu0 0.0
    %719 = vmatpush.xpose.msra.mxu0 0.0
    %720 = vmatpush.xpose.msra.mxu0 0.0
    %721 = vmatpush.xpose.msra.mxu0 0.0
    %722 = vmatpush.xpose.msra.mxu0 0.0
    %723 = vmatpush.xpose.msra.mxu0 0.0
    %724 = vmatpush.xpose.msra.mxu0 %v708
    %725 = vmatpush.xpose.msra.mxu0 %v706
    %726 = vmatmul.f32.gmra.mxu0 %v702
    %v727 = vpop.f32.mrf.mxu0
    %v728 = vadd.f32 0.0, %v727
    %729 = vmatmul.f32.gmra.mxu0 %v704
    %v730 = vpop.f32.mrf.mxu0
    %v731 = vadd.f32 0.0, %v730
    %732 = vdwg.mxu0
    %v733 = vmul.f32 %v728, 0.35355338
    %v734 = vmul.f32 %v731, 0.35355338
    %v735 = vadd.f32 %v733, %v312
    %v736 = vadd.f32 %v734, %v313
    %v737 = vsel %vm358, %v735, -inf
    %738 = vmax.xlane.f32.xlu0 %v737
    %v739 = vpop.xlane.xlu0 %738
    %v740 = vsel %vm358, %v736, -inf
    %741 = vmax.xlane.f32.xlu0 %v740
    %v742 = vpop.xlane.xlu0 %741
    %v743 = vsub.f32 %v735, %v739
    %v744 = vsub.f32 %v736, %v742
    %v745 = vmul.f32 %v743, 1.442695
    %v746 = vpow.pop %v745
    %v747 = vmul.f32 %v744, 1.442695
    %v748 = vpow.pop %v747
    %v749 = vsel %vm358, %v746, 0.0
    %750 = vadd.xlane.f32.xlu0 %v749
    %v751 = vpop.xlane.xlu0 %750
    %v752 = vsel %vm358, %v748, 0.0
    %753 = vadd.xlane.f32.xlu0 %v752
    %v754 = vpop.xlane.xlu0 %753
    %v755 = vrcp.pop %v751
    %v756 = vmul.f32 %v751, %v755
    %v757 = vsub.f32 1.0, %v756
    %v758 = vmul.f32 %v755, %v757
    %v759 = vadd.f32 %v755, %v758
    %vm760 = vweird.f32 %v751
    %vm761 = vweird.f32 %v755
    %vm762 = vmor %vm760, %vm761
    %v763 = vsel %vm762, %v755, %v759
    %v764 = vand.u32 2147483647, %v751
    %vm765 = vcmp.eq.f32.partialorder %v764, 8.507059e+37
    %v766 = vand.u32 %v751, 2147483648
    %v767 = vor.u32 1.1754944e-38, %v766
    %v768 = vsel %vm765, %v767, %v763
    %v769 = vmul.f32 %v746, %v768
    %v770 = vrcp.pop %v754
    %v771 = vmul.f32 %v754, %v770
    %v772 = vsub.f32 1.0, %v771
    %v773 = vmul.f32 %v770, %v772
    %v774 = vadd.f32 %v770, %v773
    %vm775 = vweird.f32 %v754
    %vm776 = vweird.f32 %v770
    %vm777 = vmor %vm775, %vm776
    %v778 = vsel %vm777, %v770, %v774
    %v779 = vand.u32 2147483647, %v754
    %vm780 = vcmp.eq.f32.partialorder %v779, 8.507059e+37
    %v781 = vand.u32 %v754, 2147483648
    %v782 = vor.u32 1.1754944e-38, %v781
    %v783 = vsel %vm780, %v782, %v778
    %v784 = vmul.f32 %v748, %v783
    %785 = vrot.lane.b32.xlu0 %v209, 40
    %v786 = vpop.permute.xlu0 %785
    %787 = vrot.lane.b32.xlu0 %v212, 40
    %v788 = vpop.permute.xlu0 %787
    %v792 = vsel %vm358, %v769, 0
    %v795 = vsel %vm358, %v784, 0
    %797 = vmatpush.msra.mxu0 0.0
    %798 = vmatpush.msra.mxu0 0.0
    %799 = vmatpush.msra.mxu0 0.0
    %800 = vmatpush.msra.mxu0 0.0
    %801 = vmatpush.msra.mxu0 0.0
    %802 = vmatpush.msra.mxu0 0.0
    %803 = vmatpush.msra.mxu0 0.0
    %804 = vmatpush.msra.mxu0 0.0
    %805 = vmatpush.msra.mxu0 0.0
    %806 = vmatpush.msra.mxu0 0.0
    %807 = vmatpush.msra.mxu0 0.0
    %808 = vmatpush.msra.mxu0 0.0
    %809 = vmatpush.msra.mxu0 0.0
    %810 = vmatpush.msra.mxu0 0.0
    %811 = vmatpush.msra.mxu0 %v788
    %812 = vmatpush.msra.mxu0 %v786
    %813 = vmatmul.f32.gmra.mxu0 %v792
    %v814 = vpop.f32.mrf.mxu0
    %v815 = vadd.f32 0.0, %v814
    %816 = vmatmul.f32.gmra.mxu0 %v795
    %v817 = vpop.f32.mrf.mxu0
    %v818 = vadd.f32 0.0, %v817
    %819 = vdwg.mxu0
    %822 = vrot.lane.b32.xlu0 %v563, 8
    %v823 = vpop.permute.xlu0 %822
    %824 = vrot.lane.b32.xlu0 %v566, 8
    %v825 = vpop.permute.xlu0 %824
    %830 = vrot.lane.b32.xlu0 %v689, 16
    %v831 = vpop.permute.xlu0 %830
    %832 = vrot.lane.b32.xlu0 %v692, 16
    %v833 = vpop.permute.xlu0 %832
    %838 = vrot.lane.b32.xlu0 %v815, 24
    %v839 = vpop.permute.xlu0 %838
    %840 = vrot.lane.b32.xlu0 %v818, 24
    %v841 = vpop.permute.xlu0 %840
    %v844 = vsel %vm320, %v437, %v823
    %v845 = vsel %vm320, %v440, %v825
    %v846 = vsel %vm358, %v844, %v831
    %v847 = vsel %vm358, %v845, %v833
    %vm848 = vcmask 195584
    %v849 = vsel %vm848, %v846, %v839
    %v850 = vsel %vm848, %v847, %v841
    %v851 = vld [vmem:[%s4] sm:$0xff]
    %v852 = vld [vmem:[%s4 + $0x8] sm:$0xff]
    %v853 = vld [vmem:[%s4 + $0x10] sm:$0xff]
    %v854 = vld [vmem:[%s4 + $0x18] sm:$0xff]
    %v856 = vsel %vm136, %v849, 0
    %v859 = vsel %vm136, %v850, 0
    %861 = vmatpush.msra.mxu0 0.0
    %862 = vmatpush.msra.mxu0 0.0
    %863 = vmatpush.msra.mxu0 0.0
    %864 = vmatpush.msra.mxu0 0.0
    %865 = vmatpush.msra.mxu0 0.0
    %866 = vmatpush.msra.mxu0 0.0
    %867 = vmatpush.msra.mxu0 0.0
    %868 = vmatpush.msra.mxu0 0.0
    %869 = vmatpush.msra.mxu0 0.0
    %870 = vmatpush.msra.mxu0 0.0
    %871 = vmatpush.msra.mxu0 0.0
    %872 = vmatpush.msra.mxu0 0.0
    %873 = vmatpush.msra.mxu0 %v854
    %874 = vmatpush.msra.mxu0 %v853
    %875 = vmatpush.msra.mxu0 %v852
    %876 = vmatpush.msra.mxu0 %v851
    %877 = vmatmul.f32.gmra.mxu0 %v856
    %v878 = vpop.f32.mrf.mxu0
    %v879 = vadd.f32 0.0, %v878
    %880 = vmatmul.f32.gmra.mxu0 %v859
    %v881 = vpop.f32.mrf.mxu0
    %v882 = vadd.f32 0.0, %v881
    %883 = vdwg.mxu0
    %v884 = vadd.f32 %v131, %v879
    %v885 = vadd.f32 %v132, %v882
    %v886 = vld [vmem:[%s2] sm:$0x1]
    %v887 = vmul.f32 %v884, %v884
    %v888 = vmul.f32 %v885, %v885
    %v889 = vsel %vm136, %v887, 0.0
    %890 = vadd.xlane.f32.xlu0 %v889
    %v891 = vpop.xlane.xlu0 %890
    %v892 = vsel %vm136, %v888, 0.0
    %893 = vadd.xlane.f32.xlu0 %v892
    %v894 = vpop.xlane.xlu0 %893
    %v895 = vmul.f32 %v891, %v149
    %v896 = vmul.f32 %v894, %v149
    %v897 = vadd.f32 %v895, 1e-05
    %v898 = vadd.f32 %v896, 1e-05
    %v899 = vrsqrt.pop %v897
    %v900 = vmul.f32 %v899, %v897
    %v901 = vmul.f32 %v900, %v899
    %v902 = vmul.f32 0.5, %v901
    %v903 = vsub.f32 1.5, %v902
    %v904 = vmul.f32 %v899, %v903
    %vm905 = vweird.f32 %v897
    %vm906 = vweird.f32 %v899
    %vm907 = vmor %vm905, %vm906
    %v908 = vsel %vm907, %v899, %v904
    %v909 = vrsqrt.pop %v898
    %v910 = vmul.f32 %v909, %v898
    %v911 = vmul.f32 %v910, %v909
    %v912 = vmul.f32 0.5, %v911
    %v913 = vsub.f32 1.5, %v912
    %v914 = vmul.f32 %v909, %v913
    %vm915 = vweird.f32 %v898
    %vm916 = vweird.f32 %v909
    %vm917 = vmor %vm915, %vm916
    %v918 = vsel %vm917, %v909, %v914
    %v919 = vmul.f32 %v884, %v908
    %v920 = vmul.f32 %v885, %v918
    %v922 = vperm.slane %v886, 0
    %v924 = vmul.f32 %v919, %v922
    %v925 = vmul.f32 %v920, %v922
    %v926 = vld [vmem:[%s5] sm:$0xff]
    %v927 = vld [vmem:[%s5 + $0x8] sm:$0xff]
    %v928 = vld [vmem:[%s5 + $0x10] sm:$0xff]
    %v929 = vld [vmem:[%s5 + $0x18] sm:$0xff]
    %v931 = vsel %vm136, %v924, 0
    %v934 = vsel %vm136, %v925, 0
    %936 = vmatpush.msra.mxu0 0.0
    %937 = vmatpush.msra.mxu0 0.0
    %938 = vmatpush.msra.mxu0 0.0
    %939 = vmatpush.msra.mxu0 0.0
    %940 = vmatpush.msra.mxu0 0.0
    %941 = vmatpush.msra.mxu0 0.0
    %942 = vmatpush.msra.mxu0 0.0
    %943 = vmatpush.msra.mxu0 0.0
    %944 = vmatpush.msra.mxu0 0.0
    %945 = vmatpush.msra.mxu0 0.0
    %946 = vmatpush.msra.mxu0 0.0
    %947 = vmatpush.msra.mxu0 0.0
    %948 = vmatpush.msra.mxu0 %v929
    %949 = vmatpush.msra.mxu0 %v928
    %950 = vmatpush.msra.mxu0 %v927
    %951 = vmatpush.msra.mxu0 %v926
    %952 = vmatmul.f32.gmra.mxu0 %v931
    %v953 = vpop.f32.mrf.mxu0
    %v954 = vadd.f32 0.0, %v953
    %955 = vmatmul.f32.gmra.mxu0 %v934
    %v956 = vpop.f32.mrf.mxu0
    %v957 = vadd.f32 0.0, %v956
    %958 = vdwg.mxu0
    %v959 = vxor.u32 %v954, 2147483648
    %v960 = vxor.u32 %v957, 2147483648
    %v961 = vmul.f32 %v959, 1.442695
    %v962 = vpow.pop %v961
    %v963 = vmul.f32 %v960, 1.442695
    %v964 = vpow.pop %v963
    %v965 = vadd.f32 %v962, 1.0
    %v966 = vadd.f32 %v964, 1.0
    %v967 = vrcp.pop %v965
    %v968 = vmul.f32 %v965, %v967
    %v969 = vsub.f32 1.0, %v968
    %v970 = vmul.f32 %v967, %v969
    %v971 = vadd.f32 %v967, %v970
    %vm972 = vweird.f32 %v965
    %vm973 = vweird.f32 %v967
    %vm974 = vmor %vm972, %vm973
    %v975 = vsel %vm974, %v967, %v971
    %v976 = vand.u32 2147483647, %v965
    %vm977 = vcmp.eq.f32.partialorder %v976, 8.507059e+37
    %v978 = vand.u32 %v965, 2147483648
    %v979 = vor.u32 1.1754944e-38, %v978
    %v980 = vsel %vm977, %v979, %v975
    %v981 = vmul.f32 1.0, %v980
    %v982 = vrcp.pop %v966
    %v983 = vmul.f32 %v966, %v982
    %v984 = vsub.f32 1.0, %v983
    %v985 = vmul.f32 %v982, %v984
    %v986 = vadd.f32 %v982, %v985
    %vm987 = vweird.f32 %v966
    %vm988 = vweird.f32 %v982
    %vm989 = vmor %vm987, %vm988
    %v990 = vsel %vm989, %v982, %v986
    %v991 = vand.u32 2147483647, %v966
    %vm992 = vcmp.eq.f32.partialorder %v991, 8.507059e+37
    %v993 = vand.u32 %v966, 2147483648
    %v994 = vor.u32 1.1754944e-38, %v993
    %v995 = vsel %vm992, %v994, %v990
    %v996 = vmul.f32 1.0, %v995
    %v997 = vmul.f32 %v954, %v981
    %v998 = vmul.f32 %v957, %v996
    %1001 = vrot.lane.b32.xlu0 %v954, 64
    %v1002 = vpop.permute.xlu0 %1001
    %1003 = vrot.lane.b32.xlu0 %v957, 64
    %v1004 = vpop.permute.xlu0 %1003
    %v1007 = vmul.f32 %v997, %v1002
    %v1008 = vmul.f32 %v998, %v1004
    %v1009 = vld [vmem:[%s6] sm:$0xff]
    %v1010 = vld [vmem:[%s6 + $0x8] sm:$0xff]
    %v1011 = vld [vmem:[%s6 + $0x10] sm:$0xff]
    %v1012 = vld [vmem:[%s6 + $0x18] sm:$0xff]
    %v1013 = vld [vmem:[%s6 + $0x20] sm:$0xff]
    %v1014 = vld [vmem:[%s6 + $0x28] sm:$0xff]
    %v1015 = vld [vmem:[%s6 + $0x30] sm:$0xff]
    %v1016 = vld [vmem:[%s6 + $0x38] sm:$0xff]
    %vm1017 = vcmask 523264
    %v1019 = vsel %vm1017, %v1007, 0
    %v1022 = vsel %vm1017, %v1008, 0
    %1024 = vmatpush.msra.mxu0 0.0
    %1025 = vmatpush.msra.mxu0 0.0
    %1026 = vmatpush.msra.mxu0 0.0
    %1027 = vmatpush.msra.mxu0 0.0
    %1028 = vmatpush.msra.mxu0 0.0
    %1029 = vmatpush.msra.mxu0 0.0
    %1030 = vmatpush.msra.mxu0 0.0
    %1031 = vmatpush.msra.mxu0 0.0
    %1032 = vmatpush.msra.mxu0 %v1016
    %1033 = vmatpush.msra.mxu0 %v1015
    %1034 = vmatpush.msra.mxu0 %v1014
    %1035 = vmatpush.msra.mxu0 %v1013
    %1036 = vmatpush.msra.mxu0 %v1012
    %1037 = vmatpush.msra.mxu0 %v1011
    %1038 = vmatpush.msra.mxu0 %v1010
    %1039 = vmatpush.msra.mxu0 %v1009
    %1040 = vmatmul.f32.gmra.mxu0 %v1019
    %v1041 = vpop.f32.mrf.mxu0
    %v1042 = vadd.f32 0.0, %v1041
    %1043 = vmatmul.f32.gmra.mxu0 %v1022
    %v1044 = vpop.f32.mrf.mxu0
    %v1045 = vadd.f32 0.0, %v1044
    %1046 = vdwg.mxu0
    %v1047 = vadd.f32 %v884, %v1042
    %v1048 = vadd.f32 %v885, %v1045
    %1049 = vst.msk [vmem:[#allocation13] sm:$0xff] %vm136, %v1047
    %1050 = vst.msk [vmem:[#allocation13 + $0x8] sm:$0xff] %vm136, %v1048
    // Predicated region
    $region70: #{tpu_custom_call.1} parent=1 // pred_check
      _
    $region71: #{tpu_custom_call.1} parent=1 // pred_check_branch
      %1052 = sbr.rel (0) target = $region73
    $region72: #{tpu_custom_call.1} parent=1 // pred_region
      %1054 = vsyncadd [#allocation4], 0
      %s1055 = sshll.u32 [#allocation13], 4
      %s1056 = int_to_ptr.vmem [resolvable:$true] %s1055
      %s1057 = sshll.u32 %s11, 4
      %s1058 = int_to_ptr.hbm [resolvable:$true] %s1057
      %1063 = dma.vmem_to_hbm [thread:$0]  %s1056, 256, %s1058, [#allocation4], 128, 128, 8
    $region73: #{tpu_custom_call.1} parent=1 // pred_fallthru
      _
    // Predicated region
    $region74: #{tpu_custom_call.1} parent=1 // pred_check
      _
    $region75: #{tpu_custom_call.1} parent=1 // pred_check_branch
      %1065 = sbr.rel (0) target = $region77
    $region76: #{tpu_custom_call.1} parent=1 // pred_region
      %1067 = dma.done [#allocation4], 256
    $region77: #{tpu_custom_call.1} parent=1 // pred_fallthru
      _
    %1068 = vsyncpa [#allocation3], 1
    %1069 = vsyncpa [#allocation6], 1
    %1070 = vsyncpa [#allocation9], 1
    %1071 = vsyncpa [#allocation12], 1
    %1072 = vsyncpa [#allocation4], 1

</llo_original>
